<compile_context>
chip_gen: v7x
topology: tpu7x:2x2x1
jax: 0.10.0
libtpu: 0.0.40
codegen_flags: <defaults>
</compile_context>

<pallas_src>
import numpy as np
import jax
import jax.numpy as jnp
from jax.experimental import pallas as pl
from jax.experimental.pallas import tpu as pltpu

LOG_STD_MIN = -20.0
LOG_STD_MAX = 2.0


def a_net_kernel(x_ref, w1_ref, b1_ref, w2_ref, b2_ref, wm_ref, bm_ref,
                 ws_ref, bs_ref, mean_ref, std_ref):
    cdt = w1_ref.dtype  # matmul operand dtype (bf16 on the fast path, f32 otherwise)

    x = x_ref[...]

    # hidden layer 1: Linear + ReLU (f32 accumulate / f32 epilogue)
    h1 = jnp.dot(x, w1_ref[...], preferred_element_type=jnp.float32) + b1_ref[...]
    h1 = jnp.maximum(h1, 0.0).astype(cdt)

    # hidden layer 2: Linear + ReLU
    h2 = jnp.dot(h1, w2_ref[...], preferred_element_type=jnp.float32) + b2_ref[...]
    h2 = jnp.maximum(h2, 0.0).astype(cdt)

    # heads: two tiny matmuls straight into the two tight outputs
    mean = jnp.dot(h2, wm_ref[...], preferred_element_type=jnp.float32) + bm_ref[...]
    log_std = jnp.dot(h2, ws_ref[...], preferred_element_type=jnp.float32) + bs_ref[...]

    mean_ref[...] = mean
    # exp only over the action_n std lanes; clip bounds garbage rows in a
    # ragged last tile so nothing overflows (those rows are dropped anyway).
    std_ref[...] = jnp.exp(jnp.clip(log_std, LOG_STD_MIN, LOG_STD_MAX))


def pack_a_net_params(params, compute_dtype=jnp.bfloat16):
    """One-time packing (outside the hot path): pre-transpose weights to
    [in, out] in the matmul operand dtype, biases to [1, out] f32."""
    (w1, b1), (w2, b2), (wm, bm), (ws, bs) = params
    cdt = jnp.dtype(compute_dtype)

    def w(t):  # [out, in] torch layout -> [in, out] operand layout
        return jnp.asarray(t).T.astype(cdt)

    def b(t):
        return jnp.asarray(t).reshape(1, -1).astype(jnp.float32)

    return dict(
        w1=w(w1), b1=b(b1),
        w2=w(w2), b2=b(b2),
        wm=w(wm), bm=b(bm),
        ws=w(ws), bs=b(bs),
        action_n=int(np.asarray(wm).shape[0]),
        compute_dtype=cdt,
    )


def _pick_batch_tile(B, cap=8192):
    """Small batches: one step.  Large batches: >= 4 grid steps (so v7x can
    shard the 'parallel' axis over both TensorCores and BlockSpec
    double-buffering overlaps DMA), capped at 8192 rows."""
    if B <= 512:
        return B
    tb = min(cap, pl.cdiv(B, 4))
    return max(8, (tb // 8) * 8)


def a_net_forward(x, packed, *, batch_tile=None):
    """x: [B, state_n] float32. packed: output of pack_a_net_params.
    Returns (mean, std), each [B, action_n] float32."""
    w1, b1 = packed["w1"], packed["b1"]
    w2, b2 = packed["w2"], packed["b2"]
    wm, bm = packed["wm"], packed["bm"]
    ws, bs = packed["ws"], packed["bs"]
    action_n = packed["action_n"]
    cdt = packed["compute_dtype"]

    B, state_n = x.shape
    net_width = w1.shape[1]

    tb = _pick_batch_tile(B) if batch_tile is None else max(8, min(batch_tile, B))
    if tb != B:
        tb = max(8, (tb // 8) * 8)
    grid = (pl.cdiv(B, tb),)

    # Halve the x DMA on the bf16 path (weights were already packed in bf16).
    x_in = x.astype(cdt)

    def const(shape):  # weights/biases stay VMEM-resident across the batch grid
        return pl.BlockSpec(shape, lambda i: (0, 0))

    mean, std = pl.pallas_call(
        a_net_kernel,
        out_shape=(jax.ShapeDtypeStruct((B, action_n), jnp.float32),
                   jax.ShapeDtypeStruct((B, action_n), jnp.float32)),
        grid_spec=pltpu.PrefetchScalarGridSpec(
            num_scalar_prefetch=0,
            grid=grid,
            in_specs=[
                pl.BlockSpec((tb, state_n), lambda i: (i, 0)),
                const((state_n, net_width)), const((1, net_width)),
                const((net_width, net_width)), const((1, net_width)),
                const((net_width, action_n)), const((1, action_n)),
                const((net_width, action_n)), const((1, action_n)),
            ],
            out_specs=[
                pl.BlockSpec((tb, action_n), lambda i: (i, 0)),
                pl.BlockSpec((tb, action_n), lambda i: (i, 0)),
            ],
        ),
        compiler_params=pltpu.CompilerParams(
            dimension_semantics=("parallel",),
            # Explicit so large tiles also compile under v5e's 16 MiB default
            # scoped VMEM; well under v7x's 64 MiB physical VMEM.
            vmem_limit_bytes=32 * 1024 * 1024,
        ),
    )(x_in, w1, b1, w2, b2, wm, bm, ws, bs)

    return mean, std


def layer_init(key, out_features, in_features, std=np.sqrt(2), bias_const=0.0):
    """Deterministic orthogonal init (matches nn.init.orthogonal_ semantics)."""
    w = jax.nn.initializers.orthogonal(scale=std)(key, (out_features, in_features),
                                                  jnp.float32)
    b = jnp.full((out_features,), bias_const, dtype=jnp.float32)
    return w, b


def make_a_net_params(key, action_n, state_n, net_width):
    k1, k2, k3, k4 = jax.random.split(key, 4)
    return (
        layer_init(k1, net_width, state_n),
        layer_init(k2, net_width, net_width),
        layer_init(k3, action_n, net_width),
        layer_init(k4, action_n, net_width),
    )


def a_net_reference(x, params):
    """Plain-JAX reference for correctness checking (torch layout params)."""
    (w1, b1), (w2, b2), (wm, bm), (ws, bs) = params
    h = jnp.maximum(x @ w1.T + b1, 0.0)
    h = jnp.maximum(h @ w2.T + b2, 0.0)
    mean = h @ wm.T + bm
    std = jnp.exp(jnp.clip(h @ ws.T + bs, LOG_STD_MIN, LOG_STD_MAX))
    return mean, std


if __name__ == "__main__":
    # Small shapes consistent with the module: batch=8 states of dim 16,
    # hidden width 32, 4-dim action space.
    batch, state_n, net_width, action_n = 8, 16, 32, 4

    key = jax.random.PRNGKey(0)
    k_params, k_x = jax.random.split(key)

    params = make_a_net_params(k_params, action_n, state_n, net_width)
    x = jax.random.normal(k_x, (batch, state_n), dtype=jnp.float32)

    ref_mean, ref_std = a_net_reference(x, params)

    # Exact-precision path (f32 matmul operands): tight tolerance.
    packed_f32 = pack_a_net_params(params, compute_dtype=jnp.float32)
    mean, std = a_net_forward(x, packed_f32)
    jax.block_until_ready((mean, std))
    np.testing.assert_allclose(np.asarray(mean), np.asarray(ref_mean),
                               rtol=1e-5, atol=1e-5)
    np.testing.assert_allclose(np.asarray(std), np.asarray(ref_std),
                               rtol=1e-5, atol=1e-5)

    # Fast path (bf16 matmul operands for v6e/v7x MXU + halved DMA): sanity
    # check with a loose tolerance.
    packed_bf16 = pack_a_net_params(params, compute_dtype=jnp.bfloat16)
    mean_bf, std_bf = a_net_forward(x, packed_bf16)
    jax.block_until_ready((mean_bf, std_bf))
    np.testing.assert_allclose(np.asarray(mean_bf), np.asarray(ref_mean),
                               rtol=1e-1, atol=1e-1)
    np.testing.assert_allclose(np.asarray(std_bf), np.asarray(ref_std),
                               rtol=1e-1, atol=1e-1)

    print("KERNEL_OK")
</pallas_src>

<mosaic_0001>
module attributes {stable_mosaic.version = 11 : i64} {
  func.func @a_net_kernel(%arg0: i32, %arg1: memref<8x16xf32, #tpu.memory_space<vmem>>, %arg2: memref<16x32xf32, #tpu.memory_space<vmem>>, %arg3: memref<1x32xf32, #tpu.memory_space<vmem>>, %arg4: memref<32x32xf32, #tpu.memory_space<vmem>>, %arg5: memref<1x32xf32, #tpu.memory_space<vmem>>, %arg6: memref<32x4xf32, #tpu.memory_space<vmem>>, %arg7: memref<1x4xf32, #tpu.memory_space<vmem>>, %arg8: memref<32x4xf32, #tpu.memory_space<vmem>>, %arg9: memref<1x4xf32, #tpu.memory_space<vmem>>, %arg10: memref<8x4xf32, #tpu.memory_space<vmem>>, %arg11: memref<8x4xf32, #tpu.memory_space<vmem>>) attributes {dimension_semantics = [#tpu.dimension_semantics<parallel>], iteration_bounds = array<i64: 1>, scalar_prefetch = 0 : i64, scratch_operands = 0 : i64, tpu.core_type = #tpu.core_type<tc>, window_params = [{transform_indices = @transform_0, window_bounds = array<i64: 8, 16>}, {pipeline_mode = #tpu.pipeline_mode<synchronous>, transform_indices = @transform_1, window_bounds = array<i64: 16, 32>}, {pipeline_mode = #tpu.pipeline_mode<synchronous>, transform_indices = @transform_2, window_bounds = array<i64: 1, 32>}, {pipeline_mode = #tpu.pipeline_mode<synchronous>, transform_indices = @transform_3, window_bounds = array<i64: 32, 32>}, {pipeline_mode = #tpu.pipeline_mode<synchronous>, transform_indices = @transform_4, window_bounds = array<i64: 1, 32>}, {pipeline_mode = #tpu.pipeline_mode<synchronous>, transform_indices = @transform_5, window_bounds = array<i64: 32, 4>}, {pipeline_mode = #tpu.pipeline_mode<synchronous>, transform_indices = @transform_6, window_bounds = array<i64: 1, 4>}, {pipeline_mode = #tpu.pipeline_mode<synchronous>, transform_indices = @transform_7, window_bounds = array<i64: 32, 4>}, {pipeline_mode = #tpu.pipeline_mode<synchronous>, transform_indices = @transform_8, window_bounds = array<i64: 1, 4>}, {transform_indices = @transform_9, window_bounds = array<i64: 8, 4>}, {transform_indices = @transform_10, window_bounds = array<i64: 8, 4>}]} {
    %c0 = arith.constant 0 : index
    %c0_0 = arith.constant 0 : index
    %0 = vector.load %arg1[%c0, %c0_0] : memref<8x16xf32, #tpu.memory_space<vmem>>, vector<8x16xf32>
    %c0_1 = arith.constant 0 : index
    %c0_2 = arith.constant 0 : index
    %1 = vector.load %arg2[%c0_1, %c0_2] : memref<16x32xf32, #tpu.memory_space<vmem>>, vector<16x32xf32>
    %cst = arith.constant dense<0.000000e+00> : vector<8x32xf32>
    %2 = tpu.matmul %0, %1, %cst {dimension_numbers = #tpu.dot_dimension_numbers<[1], [0], [0], [1], [0, 0, 1, 1], [], []>} : vector<8x16xf32>, vector<16x32xf32>, vector<8x32xf32> -> vector<8x32xf32>
    %c0_3 = arith.constant 0 : index
    %c0_4 = arith.constant 0 : index
    %3 = vector.load %arg3[%c0_3, %c0_4] : memref<1x32xf32, #tpu.memory_space<vmem>>, vector<1x32xf32>
    %4 = vector.broadcast %3 : vector<1x32xf32> to vector<8x32xf32>
    %5 = arith.addf %2, %4 : vector<8x32xf32>
    %cst_5 = arith.constant 0.000000e+00 : f32
    %6 = vector.broadcast %cst_5 : f32 to vector<8x32xf32>
    %7 = arith.maximumf %5, %6 : vector<8x32xf32>
    %c0_6 = arith.constant 0 : index
    %c0_7 = arith.constant 0 : index
    %8 = vector.load %arg4[%c0_6, %c0_7] : memref<32x32xf32, #tpu.memory_space<vmem>>, vector<32x32xf32>
    %cst_8 = arith.constant dense<0.000000e+00> : vector<8x32xf32>
    %9 = tpu.matmul %7, %8, %cst_8 {dimension_numbers = #tpu.dot_dimension_numbers<[1], [0], [0], [1], [0, 0, 1, 1], [], []>} : vector<8x32xf32>, vector<32x32xf32>, vector<8x32xf32> -> vector<8x32xf32>
    %c0_9 = arith.constant 0 : index
    %c0_10 = arith.constant 0 : index
    %10 = vector.load %arg5[%c0_9, %c0_10] : memref<1x32xf32, #tpu.memory_space<vmem>>, vector<1x32xf32>
    %11 = vector.broadcast %10 : vector<1x32xf32> to vector<8x32xf32>
    %12 = arith.addf %9, %11 : vector<8x32xf32>
    %cst_11 = arith.constant 0.000000e+00 : f32
    %13 = vector.broadcast %cst_11 : f32 to vector<8x32xf32>
    %14 = arith.maximumf %12, %13 : vector<8x32xf32>
    %c0_12 = arith.constant 0 : index
    %c0_13 = arith.constant 0 : index
    %15 = vector.load %arg6[%c0_12, %c0_13] : memref<32x4xf32, #tpu.memory_space<vmem>>, vector<32x4xf32>
    %cst_14 = arith.constant dense<0.000000e+00> : vector<8x4xf32>
    %16 = tpu.matmul %14, %15, %cst_14 {dimension_numbers = #tpu.dot_dimension_numbers<[1], [0], [0], [1], [0, 0, 1, 1], [], []>} : vector<8x32xf32>, vector<32x4xf32>, vector<8x4xf32> -> vector<8x4xf32>
    %c0_15 = arith.constant 0 : index
    %c0_16 = arith.constant 0 : index
    %17 = vector.load %arg7[%c0_15, %c0_16] : memref<1x4xf32, #tpu.memory_space<vmem>>, vector<1x4xf32>
    %18 = vector.broadcast %17 : vector<1x4xf32> to vector<8x4xf32>
    %19 = arith.addf %16, %18 : vector<8x4xf32>
    %c0_17 = arith.constant 0 : index
    %c0_18 = arith.constant 0 : index
    %20 = vector.load %arg8[%c0_17, %c0_18] : memref<32x4xf32, #tpu.memory_space<vmem>>, vector<32x4xf32>
    %cst_19 = arith.constant dense<0.000000e+00> : vector<8x4xf32>
    %21 = tpu.matmul %14, %20, %cst_19 {dimension_numbers = #tpu.dot_dimension_numbers<[1], [0], [0], [1], [0, 0, 1, 1], [], []>} : vector<8x32xf32>, vector<32x4xf32>, vector<8x4xf32> -> vector<8x4xf32>
    %c0_20 = arith.constant 0 : index
    %c0_21 = arith.constant 0 : index
    %22 = vector.load %arg9[%c0_20, %c0_21] : memref<1x4xf32, #tpu.memory_space<vmem>>, vector<1x4xf32>
    %23 = vector.broadcast %22 : vector<1x4xf32> to vector<8x4xf32>
    %24 = arith.addf %21, %23 : vector<8x4xf32>
    %c0_22 = arith.constant 0 : index
    %c0_23 = arith.constant 0 : index
    %25 = vector.load %arg10[%c0_22, %c0_23] : memref<8x4xf32, #tpu.memory_space<vmem>>, vector<8x4xf32>
    tpu.vector_store %arg10[%c0_22, %c0_23], %19 {strides = array<i32>} : memref<8x4xf32, #tpu.memory_space<vmem>>, vector<8x4xf32>,
    %cst_24 = arith.constant -2.000000e+01 : f32
    %cst_25 = arith.constant 2.000000e+00 : f32
    %26 = vector.broadcast %cst_24 : f32 to vector<8x4xf32>
    %27 = arith.maximumf %26, %24 : vector<8x4xf32>
    %28 = vector.broadcast %cst_25 : f32 to vector<8x4xf32>
    %29 = arith.minimumf %28, %27 : vector<8x4xf32>
    %30 = math.exp %29 : vector<8x4xf32>
    %c0_26 = arith.constant 0 : index
    %c0_27 = arith.constant 0 : index
    %31 = vector.load %arg11[%c0_26, %c0_27] : memref<8x4xf32, #tpu.memory_space<vmem>>, vector<8x4xf32>
    tpu.vector_store %arg11[%c0_26, %c0_27], %30 {strides = array<i32>} : memref<8x4xf32, #tpu.memory_space<vmem>>, vector<8x4xf32>,
    return
  }
  func.func @transform_0(%arg0: i32) -> (i32, i32) {
    %c0_i32 = arith.constant 0 : i32
    %c0_i32_0 = arith.constant 0 : i32
    return %arg0, %c0_i32 : i32, i32
  }
  func.func @transform_1(%arg0: i32) -> (i32, i32) {
    %c0_i32 = arith.constant 0 : i32
    %c0_i32_0 = arith.constant 0 : i32
    %c0_i32_1 = arith.constant 0 : i32
    return %c0_i32, %c0_i32_0 : i32, i32
  }
  func.func @transform_2(%arg0: i32) -> (i32, i32) {
    %c0_i32 = arith.constant 0 : i32
    %c0_i32_0 = arith.constant 0 : i32
    %c0_i32_1 = arith.constant 0 : i32
    return %c0_i32, %c0_i32_0 : i32, i32
  }
  func.func @transform_3(%arg0: i32) -> (i32, i32) {
    %c0_i32 = arith.constant 0 : i32
    %c0_i32_0 = arith.constant 0 : i32
    %c0_i32_1 = arith.constant 0 : i32
    return %c0_i32, %c0_i32_0 : i32, i32
  }
  func.func @transform_4(%arg0: i32) -> (i32, i32) {
    %c0_i32 = arith.constant 0 : i32
    %c0_i32_0 = arith.constant 0 : i32
    %c0_i32_1 = arith.constant 0 : i32
    return %c0_i32, %c0_i32_0 : i32, i32
  }
  func.func @transform_5(%arg0: i32) -> (i32, i32) {
    %c0_i32 = arith.constant 0 : i32
    %c0_i32_0 = arith.constant 0 : i32
    %c0_i32_1 = arith.constant 0 : i32
    return %c0_i32, %c0_i32_0 : i32, i32
  }
  func.func @transform_6(%arg0: i32) -> (i32, i32) {
    %c0_i32 = arith.constant 0 : i32
    %c0_i32_0 = arith.constant 0 : i32
    %c0_i32_1 = arith.constant 0 : i32
    return %c0_i32, %c0_i32_0 : i32, i32
  }
  func.func @transform_7(%arg0: i32) -> (i32, i32) {
    %c0_i32 = arith.constant 0 : i32
    %c0_i32_0 = arith.constant 0 : i32
    %c0_i32_1 = arith.constant 0 : i32
    return %c0_i32, %c0_i32_0 : i32, i32
  }
  func.func @transform_8(%arg0: i32) -> (i32, i32) {
    %c0_i32 = arith.constant 0 : i32
    %c0_i32_0 = arith.constant 0 : i32
    %c0_i32_1 = arith.constant 0 : i32
    return %c0_i32, %c0_i32_0 : i32, i32
  }
  func.func @transform_9(%arg0: i32) -> (i32, i32) {
    %c0_i32 = arith.constant 0 : i32
    %c0_i32_0 = arith.constant 0 : i32
    return %arg0, %c0_i32 : i32, i32
  }
  func.func @transform_10(%arg0: i32) -> (i32, i32) {
    %c0_i32 = arith.constant 0 : i32
    %c0_i32_0 = arith.constant 0 : i32
    return %arg0, %c0_i32 : i32, i32
  }
}

</mosaic_0001>

<llo_original>
// kernel: tpu_custom_call.1
$region0: #{tpu_custom_call.1}
  #allocation0 [shape = 'u32[]', space=smem, size = 0x4, offset = 0x4, fixed_abs, tag = 'smem constant byte address 0x4 - core index']
  #allocation1 [shape = 'u32[144,128]{1,0:T(1,128)}', space=vmem, size = 0x12000, scoped, tag = 'internal scratch']
  %s0 = inlined_call_operand.vmem [shape: f32[8,16], index: 0, kind: input, shape index: {}]
  %s1 = inlined_call_operand.vmem [shape: f32[16,32], index: 1, kind: input, shape index: {}]
  %s2 = inlined_call_operand.vmem [shape: f32[1,32], index: 2, kind: input, shape index: {}]
  %s3 = inlined_call_operand.vmem [shape: f32[32,32], index: 3, kind: input, shape index: {}]
  %s4 = inlined_call_operand.vmem [shape: f32[1,32], index: 4, kind: input, shape index: {}]
  %s5 = inlined_call_operand.vmem [shape: f32[32,4], index: 5, kind: input, shape index: {}]
  %s6 = inlined_call_operand.vmem [shape: f32[1,4], index: 6, kind: input, shape index: {}]
  %s7 = inlined_call_operand.vmem [shape: f32[32,4], index: 7, kind: input, shape index: {}]
  %s8 = inlined_call_operand.vmem [shape: f32[1,4], index: 8, kind: input, shape index: {}]
  %s9 = inlined_call_operand.vmem [shape: f32[8,4], index: 9, kind: output, shape index: {0}]
  %s10 = inlined_call_operand.vmem [shape: f32[8,4], index: 10, kind: output, shape index: {1}]
  %11 = xla_tuple %s9, %s10
  %s12 = sld [smem:[#allocation0]]
  $region54: #{tpu_custom_call.1} parent=0
    _
  %s14 = ssub.s32 1, %s12
  %s15 = scalar_select 0, %s14, %s12
  // Predicated region
  $region2: #{tpu_custom_call.1} parent=0 // pred_check
    _
  $region3: #{tpu_custom_call.1} parent=0 // pred_check_branch
    %17 = sbr.rel (0) target = $region5
  $region4: #{tpu_custom_call.1} parent=0 // pred_region
    _
  $region5: #{tpu_custom_call.1} parent=0 // pred_fallthru
    _
  // Predicated region
  $region6: #{tpu_custom_call.1} parent=0 // pred_check
    _
  $region7: #{tpu_custom_call.1} parent=0 // pred_check_branch
    %19 = sbr.rel (0) target = $region9
  $region8: #{tpu_custom_call.1} parent=0 // pred_region
    _
  $region9: #{tpu_custom_call.1} parent=0 // pred_fallthru
    _
  // Predicated region
  $region10: #{tpu_custom_call.1} parent=0 // pred_check
    _
  $region11: #{tpu_custom_call.1} parent=0 // pred_check_branch
    %21 = sbr.rel (0) target = $region13
  $region12: #{tpu_custom_call.1} parent=0 // pred_region
    _
  $region13: #{tpu_custom_call.1} parent=0 // pred_fallthru
    _
  // Predicated region
  $region14: #{tpu_custom_call.1} parent=0 // pred_check
    _
  $region15: #{tpu_custom_call.1} parent=0 // pred_check_branch
    %23 = sbr.rel (0) target = $region17
  $region16: #{tpu_custom_call.1} parent=0 // pred_region
    _
  $region17: #{tpu_custom_call.1} parent=0 // pred_fallthru
    _
  // Predicated region
  $region18: #{tpu_custom_call.1} parent=0 // pred_check
    _
  $region19: #{tpu_custom_call.1} parent=0 // pred_check_branch
    %25 = sbr.rel (0) target = $region21
  $region20: #{tpu_custom_call.1} parent=0 // pred_region
    _
  $region21: #{tpu_custom_call.1} parent=0 // pred_fallthru
    _
  // Predicated region
  $region22: #{tpu_custom_call.1} parent=0 // pred_check
    _
  $region23: #{tpu_custom_call.1} parent=0 // pred_check_branch
    %27 = sbr.rel (0) target = $region25
  $region24: #{tpu_custom_call.1} parent=0 // pred_region
    _
  $region25: #{tpu_custom_call.1} parent=0 // pred_fallthru
    _
  // Predicated region
  $region26: #{tpu_custom_call.1} parent=0 // pred_check
    _
  $region27: #{tpu_custom_call.1} parent=0 // pred_check_branch
    %29 = sbr.rel (0) target = $region29
  $region28: #{tpu_custom_call.1} parent=0 // pred_region
    _
  $region29: #{tpu_custom_call.1} parent=0 // pred_fallthru
    _
  // Predicated region
  $region30: #{tpu_custom_call.1} parent=0 // pred_check
    _
  $region31: #{tpu_custom_call.1} parent=0 // pred_check_branch
    %31 = sbr.rel (0) target = $region33
  $region32: #{tpu_custom_call.1} parent=0 // pred_region
    _
  $region33: #{tpu_custom_call.1} parent=0 // pred_fallthru
    _
  // Predicated region
  $region34: #{tpu_custom_call.1} parent=0 // pred_check
    _
  $region35: #{tpu_custom_call.1} parent=0 // pred_check_branch
    %33 = sbr.rel (0) target = $region37
  $region36: #{tpu_custom_call.1} parent=0 // pred_region
    _
  $region37: #{tpu_custom_call.1} parent=0 // pred_fallthru
    _
  %v34 = vld [vmem:[%s0] sm:$0xff]
  %v35 = vld [vmem:[%s1] sm:$0xff]
  %v36 = vld [vmem:[%s1 + $0x8] sm:$0xff]
  %v37 = vld [vmem:[%s2] sm:$0x1]
  %v39 = vlaneseq
  %v40 = vshrl.u32 %v39, 7
  %v41 = vsub.s32 0, %v40
  %v42 = vrot.slane %v37, %v41
  %vm44 = vcmask 130048
  %v46 = vsel %vm44, %v34, 0
  %48 = vmatprep.subr.mxu0 0.0
  %49 = vmatpush1.msra.mxu0 %v35
  %50 = vmatprep.subr.mxu0 0.0
  %51 = vmatpush1.msra.mxu0 %v36
  %52 = vmatprep.subr.mxu0 0.0
  %53 = vmatpush1.msra.mxu0 0.0
  %54 = vmatprep.subr.mxu0 0.0
  %55 = vmatpush1.msra.mxu0 0.0
  %56 = vmatprep.subr.mxu0 0.0
  %57 = vmatpush1.msra.mxu0 0.0
  %58 = vmatprep.subr.mxu0 0.0
  %59 = vmatpush1.msra.mxu0 0.0
  %60 = vmatprep.subr.mxu0 0.0
  %61 = vmatpush1.msra.mxu0 0.0
  %62 = vmatprep.subr.mxu0 0.0
  %63 = vmatpush1.msra.mxu0 0.0
  %64 = vmatprep.subr.mxu0 0.0
  %65 = vmatpush1.msra.mxu0 0.0
  %66 = vmatprep.subr.mxu0 0.0
  %67 = vmatpush1.msra.mxu0 0.0
  %68 = vmatprep.subr.mxu0 0.0
  %69 = vmatpush1.msra.mxu0 0.0
  %70 = vmatprep.subr.mxu0 0.0
  %71 = vmatpush1.msra.mxu0 0.0
  %72 = vmatprep.subr.mxu0 0.0
  %73 = vmatpush1.msra.mxu0 0.0
  %74 = vmatprep.subr.mxu0 0.0
  %75 = vmatpush1.msra.mxu0 0.0
  %76 = vmatprep.subr.mxu0 0.0
  %77 = vmatpush1.msra.mxu0 0.0
  %78 = vmatprep.subr.mxu0 0.0
  %79 = vmatpush1.msra.mxu0 0.0
  %80 = vmatprep.subr.mxu0 0.0
  %81 = vmatpush1.msra.mxu0 0.0
  %82 = vmatprep.subr.mxu0 0.0
  %83 = vmatpush1.msra.mxu0 0.0
  %84 = vmatprep.subr.mxu0 0.0
  %85 = vmatpush1.msra.mxu0 0.0
  %86 = vmatprep.subr.mxu0 0.0
  %87 = vmatpush1.msra.mxu0 0.0
  %88 = vmatprep.subr.mxu0 0.0
  %89 = vmatpush1.msra.mxu0 0.0
  %90 = vmatprep.subr.mxu0 0.0
  %91 = vmatpush1.msra.mxu0 0.0
  %92 = vmatprep.subr.mxu0 0.0
  %93 = vmatpush1.msra.mxu0 0.0
  %94 = vmatprep.subr.mxu0 0.0
  %95 = vmatpush1.msra.mxu0 0.0
  %96 = vmatprep.subr.mxu0 0.0
  %97 = vmatpush1.msra.mxu0 0.0
  %98 = vmatprep.subr.mxu0 0.0
  %99 = vmatpush1.msra.mxu0 0.0
  %100 = vmatprep.subr.mxu0 0.0
  %101 = vmatpush1.msra.mxu0 0.0
  %102 = vmatprep.subr.mxu0 0.0
  %103 = vmatpush1.msra.mxu0 0.0
  %104 = vmatprep.subr.mxu0 0.0
  %105 = vmatpush1.msra.mxu0 0.0
  %106 = vmatprep.subr.mxu0 0.0
  %107 = vmatpush1.msra.mxu0 0.0
  %108 = vmatprep.subr.mxu0 0.0
  %109 = vmatpush1.msra.mxu0 0.0
  %110 = vmatprep.subr.mxu0 0.0
  %111 = vmatpush1.msra.mxu0 0.0
  %112 = vmatprep.mubr.f32.mxu0 0.0
  %113 = vmatmul.mubr.f32.gmra.mrb[0].mxu0 %v46
  %v114 = vpop.f32.mrb[0].mxu0
  %v115 = vadd.f32 %v42, %v114
  %v116 = vpop.f32.mrb[0].mxu0
  %117 = vdwg.mxu0
  %v118 = vmax.f32 %v115, 0.0
  %v119 = vld [vmem:[%s3] sm:$0xff]
  %v120 = vld [vmem:[%s3 + $0x8] sm:$0xff]
  %v121 = vld [vmem:[%s3 + $0x10] sm:$0xff]
  %v122 = vld [vmem:[%s3 + $0x18] sm:$0xff]
  %v123 = vld [vmem:[%s4] sm:$0x1]
  %v125 = vlaneseq
  %v126 = vshrl.u32 %v125, 7
  %v127 = vsub.s32 0, %v126
  %v128 = vrot.slane %v123, %v127
  %vm130 = vcmask 261120
  %v132 = vsel %vm130, %v118, 0
  %134 = vmatprep.subr.mxu0 0.0
  %135 = vmatpush1.msra.mxu0 %v119
  %136 = vmatprep.subr.mxu0 0.0
  %137 = vmatpush1.msra.mxu0 %v120
  %138 = vmatprep.subr.mxu0 0.0
  %139 = vmatpush1.msra.mxu0 %v121
  %140 = vmatprep.subr.mxu0 0.0
  %141 = vmatpush1.msra.mxu0 %v122
  %142 = vmatprep.subr.mxu0 0.0
  %143 = vmatpush1.msra.mxu0 0.0
  %144 = vmatprep.subr.mxu0 0.0
  %145 = vmatpush1.msra.mxu0 0.0
  %146 = vmatprep.subr.mxu0 0.0
  %147 = vmatpush1.msra.mxu0 0.0
  %148 = vmatprep.subr.mxu0 0.0
  %149 = vmatpush1.msra.mxu0 0.0
  %150 = vmatprep.subr.mxu0 0.0
  %151 = vmatpush1.msra.mxu0 0.0
  %152 = vmatprep.subr.mxu0 0.0
  %153 = vmatpush1.msra.mxu0 0.0
  %154 = vmatprep.subr.mxu0 0.0
  %155 = vmatpush1.msra.mxu0 0.0
  %156 = vmatprep.subr.mxu0 0.0
  %157 = vmatpush1.msra.mxu0 0.0
  %158 = vmatprep.subr.mxu0 0.0
  %159 = vmatpush1.msra.mxu0 0.0
  %160 = vmatprep.subr.mxu0 0.0
  %161 = vmatpush1.msra.mxu0 0.0
  %162 = vmatprep.subr.mxu0 0.0
  %163 = vmatpush1.msra.mxu0 0.0
  %164 = vmatprep.subr.mxu0 0.0
  %165 = vmatpush1.msra.mxu0 0.0
  %166 = vmatprep.subr.mxu0 0.0
  %167 = vmatpush1.msra.mxu0 0.0
  %168 = vmatprep.subr.mxu0 0.0
  %169 = vmatpush1.msra.mxu0 0.0
  %170 = vmatprep.subr.mxu0 0.0
  %171 = vmatpush1.msra.mxu0 0.0
  %172 = vmatprep.subr.mxu0 0.0
  %173 = vmatpush1.msra.mxu0 0.0
  %174 = vmatprep.subr.mxu0 0.0
  %175 = vmatpush1.msra.mxu0 0.0
  %176 = vmatprep.subr.mxu0 0.0
  %177 = vmatpush1.msra.mxu0 0.0
  %178 = vmatprep.subr.mxu0 0.0
  %179 = vmatpush1.msra.mxu0 0.0
  %180 = vmatprep.subr.mxu0 0.0
  %181 = vmatpush1.msra.mxu0 0.0
  %182 = vmatprep.subr.mxu0 0.0
  %183 = vmatpush1.msra.mxu0 0.0
  %184 = vmatprep.subr.mxu0 0.0
  %185 = vmatpush1.msra.mxu0 0.0
  %186 = vmatprep.subr.mxu0 0.0
  %187 = vmatpush1.msra.mxu0 0.0
  %188 = vmatprep.subr.mxu0 0.0
  %189 = vmatpush1.msra.mxu0 0.0
  %190 = vmatprep.subr.mxu0 0.0
  %191 = vmatpush1.msra.mxu0 0.0
  %192 = vmatprep.subr.mxu0 0.0
  %193 = vmatpush1.msra.mxu0 0.0
  %194 = vmatprep.subr.mxu0 0.0
  %195 = vmatpush1.msra.mxu0 0.0
  %196 = vmatprep.subr.mxu0 0.0
  %197 = vmatpush1.msra.mxu0 0.0
  %198 = vmatprep.mubr.f32.mxu0 0.0
  %199 = vmatmul.mubr.f32.gmra.mrb[0].mxu0 %v132
  %v200 = vpop.f32.mrb[0].mxu0
  %v201 = vadd.f32 %v128, %v200
  %v202 = vpop.f32.mrb[0].mxu0
  %203 = vdwg.mxu0
  %v204 = vmax.f32 %v201, 0.0
  %v205 = vld [vmem:[%s5] sm:$0xff]
  %v206 = vld [vmem:[%s5 + $0x8] sm:$0xff]
  %v207 = vld [vmem:[%s5 + $0x10] sm:$0xff]
  %v208 = vld [vmem:[%s5 + $0x18] sm:$0xff]
  %v209 = vld [vmem:[%s6] sm:$0x1]
  %v211 = vlaneseq
  %v212 = vshrl.u32 %v211, 7
  %v213 = vsub.s32 0, %v212
  %v214 = vrot.slane %v209, %v213
  %v217 = vsel %vm130, %v204, 0
  %219 = vmatprep.subr.mxu0 0.0
  %220 = vmatpush1.msra.mxu0 %v205
  %221 = vmatprep.subr.mxu0 0.0
  %222 = vmatpush1.msra.mxu0 %v206
  %223 = vmatprep.subr.mxu0 0.0
  %224 = vmatpush1.msra.mxu0 %v207
  %225 = vmatprep.subr.mxu0 0.0
  %226 = vmatpush1.msra.mxu0 %v208
  %227 = vmatprep.subr.mxu0 0.0
  %228 = vmatpush1.msra.mxu0 0.0
  %229 = vmatprep.subr.mxu0 0.0
  %230 = vmatpush1.msra.mxu0 0.0
  %231 = vmatprep.subr.mxu0 0.0
  %232 = vmatpush1.msra.mxu0 0.0
  %233 = vmatprep.subr.mxu0 0.0
  %234 = vmatpush1.msra.mxu0 0.0
  %235 = vmatprep.subr.mxu0 0.0
  %236 = vmatpush1.msra.mxu0 0.0
  %237 = vmatprep.subr.mxu0 0.0
  %238 = vmatpush1.msra.mxu0 0.0
  %239 = vmatprep.subr.mxu0 0.0
  %240 = vmatpush1.msra.mxu0 0.0
  %241 = vmatprep.subr.mxu0 0.0
  %242 = vmatpush1.msra.mxu0 0.0
  %243 = vmatprep.subr.mxu0 0.0
  %244 = vmatpush1.msra.mxu0 0.0
  %245 = vmatprep.subr.mxu0 0.0
  %246 = vmatpush1.msra.mxu0 0.0
  %247 = vmatprep.subr.mxu0 0.0
  %248 = vmatpush1.msra.mxu0 0.0
  %249 = vmatprep.subr.mxu0 0.0
  %250 = vmatpush1.msra.mxu0 0.0
  %251 = vmatprep.subr.mxu0 0.0
  %252 = vmatpush1.msra.mxu0 0.0
  %253 = vmatprep.subr.mxu0 0.0
  %254 = vmatpush1.msra.mxu0 0.0
  %255 = vmatprep.subr.mxu0 0.0
  %256 = vmatpush1.msra.mxu0 0.0
  %257 = vmatprep.subr.mxu0 0.0
  %258 = vmatpush1.msra.mxu0 0.0
  %259 = vmatprep.subr.mxu0 0.0
  %260 = vmatpush1.msra.mxu0 0.0
  %261 = vmatprep.subr.mxu0 0.0
  %262 = vmatpush1.msra.mxu0 0.0
  %263 = vmatprep.subr.mxu0 0.0
  %264 = vmatpush1.msra.mxu0 0.0
  %265 = vmatprep.subr.mxu0 0.0
  %266 = vmatpush1.msra.mxu0 0.0
  %267 = vmatprep.subr.mxu0 0.0
  %268 = vmatpush1.msra.mxu0 0.0
  %269 = vmatprep.subr.mxu0 0.0
  %270 = vmatpush1.msra.mxu0 0.0
  %271 = vmatprep.subr.mxu0 0.0
  %272 = vmatpush1.msra.mxu0 0.0
  %273 = vmatprep.subr.mxu0 0.0
  %274 = vmatpush1.msra.mxu0 0.0
  %275 = vmatprep.subr.mxu0 0.0
  %276 = vmatpush1.msra.mxu0 0.0
  %277 = vmatprep.subr.mxu0 0.0
  %278 = vmatpush1.msra.mxu0 0.0
  %279 = vmatprep.subr.mxu0 0.0
  %280 = vmatpush1.msra.mxu0 0.0
  %281 = vmatprep.subr.mxu0 0.0
  %282 = vmatpush1.msra.mxu0 0.0
  %283 = vmatprep.mubr.f32.mxu0 0.0
  %284 = vmatmul.mubr.f32.gmra.mrb[0].mxu0 %v217
  %v285 = vpop.f32.mrb[0].mxu0
  %v286 = vadd.f32 %v214, %v285
  %v287 = vpop.f32.mrb[0].mxu0
  %288 = vdwg.mxu0
  %v289 = vld [vmem:[%s7] sm:$0xff]
  %v290 = vld [vmem:[%s7 + $0x8] sm:$0xff]
  %v291 = vld [vmem:[%s7 + $0x10] sm:$0xff]
  %v292 = vld [vmem:[%s7 + $0x18] sm:$0xff]
  %v293 = vld [vmem:[%s8] sm:$0x1]
  %v295 = vlaneseq
  %v296 = vshrl.u32 %v295, 7
  %v297 = vsub.s32 0, %v296
  %v298 = vrot.slane %v293, %v297
  %300 = vmatprep.subr.mxu0 0.0
  %301 = vmatpush1.msra.mxu0 %v289
  %302 = vmatprep.subr.mxu0 0.0
  %303 = vmatpush1.msra.mxu0 %v290
  %304 = vmatprep.subr.mxu0 0.0
  %305 = vmatpush1.msra.mxu0 %v291
  %306 = vmatprep.subr.mxu0 0.0
  %307 = vmatpush1.msra.mxu0 %v292
  %308 = vmatprep.subr.mxu0 0.0
  %309 = vmatpush1.msra.mxu0 0.0
  %310 = vmatprep.subr.mxu0 0.0
  %311 = vmatpush1.msra.mxu0 0.0
  %312 = vmatprep.subr.mxu0 0.0
  %313 = vmatpush1.msra.mxu0 0.0
  %314 = vmatprep.subr.mxu0 0.0
  %315 = vmatpush1.msra.mxu0 0.0
  %316 = vmatprep.subr.mxu0 0.0
  %317 = vmatpush1.msra.mxu0 0.0
  %318 = vmatprep.subr.mxu0 0.0
  %319 = vmatpush1.msra.mxu0 0.0
  %320 = vmatprep.subr.mxu0 0.0
  %321 = vmatpush1.msra.mxu0 0.0
  %322 = vmatprep.subr.mxu0 0.0
  %323 = vmatpush1.msra.mxu0 0.0
  %324 = vmatprep.subr.mxu0 0.0
  %325 = vmatpush1.msra.mxu0 0.0
  %326 = vmatprep.subr.mxu0 0.0
  %327 = vmatpush1.msra.mxu0 0.0
  %328 = vmatprep.subr.mxu0 0.0
  %329 = vmatpush1.msra.mxu0 0.0
  %330 = vmatprep.subr.mxu0 0.0
  %331 = vmatpush1.msra.mxu0 0.0
  %332 = vmatprep.subr.mxu0 0.0
  %333 = vmatpush1.msra.mxu0 0.0
  %334 = vmatprep.subr.mxu0 0.0
  %335 = vmatpush1.msra.mxu0 0.0
  %336 = vmatprep.subr.mxu0 0.0
  %337 = vmatpush1.msra.mxu0 0.0
  %338 = vmatprep.subr.mxu0 0.0
  %339 = vmatpush1.msra.mxu0 0.0
  %340 = vmatprep.subr.mxu0 0.0
  %341 = vmatpush1.msra.mxu0 0.0
  %342 = vmatprep.subr.mxu0 0.0
  %343 = vmatpush1.msra.mxu0 0.0
  %344 = vmatprep.subr.mxu0 0.0
  %345 = vmatpush1.msra.mxu0 0.0
  %346 = vmatprep.subr.mxu0 0.0
  %347 = vmatpush1.msra.mxu0 0.0
  %348 = vmatprep.subr.mxu0 0.0
  %349 = vmatpush1.msra.mxu0 0.0
  %350 = vmatprep.subr.mxu0 0.0
  %351 = vmatpush1.msra.mxu0 0.0
  %352 = vmatprep.subr.mxu0 0.0
  %353 = vmatpush1.msra.mxu0 0.0
  %354 = vmatprep.subr.mxu0 0.0
  %355 = vmatpush1.msra.mxu0 0.0
  %356 = vmatprep.subr.mxu0 0.0
  %357 = vmatpush1.msra.mxu0 0.0
  %358 = vmatprep.subr.mxu0 0.0
  %359 = vmatpush1.msra.mxu0 0.0
  %360 = vmatprep.subr.mxu0 0.0
  %361 = vmatpush1.msra.mxu0 0.0
  %362 = vmatprep.subr.mxu0 0.0
  %363 = vmatpush1.msra.mxu0 0.0
  %364 = vmatprep.mubr.f32.mxu0 0.0
  %365 = vmatmul.mubr.f32.gmra.mrb[0].mxu0 %v217
  %v366 = vpop.f32.mrb[0].mxu0
  %v367 = vadd.f32 %v298, %v366
  %v368 = vpop.f32.mrb[0].mxu0
  %369 = vdwg.mxu0
  %vm370 = vcmask 31744
  %371 = vst.msk [vmem:[%s9] sm:$0xff] %vm370, %v286
  %v372 = vmax.f32 %v367, -20.0
  %v373 = vmin.f32 %v372, 2.0
  %v374 = vmul.f32 %v373, 1.442695
  %v375 = vpow.pop %v374
  %376 = vst.msk [vmem:[%s10] sm:$0xff] %vm370, %v375
  // Predicated region
  $region38: #{tpu_custom_call.1} parent=0 // pred_check
    _
  $region39: #{tpu_custom_call.1} parent=0 // pred_check_branch
    %378 = sbr.rel (0) target = $region41
  $region40: #{tpu_custom_call.1} parent=0 // pred_region
    _
  $region41: #{tpu_custom_call.1} parent=0 // pred_fallthru
    _
  // Predicated region
  $region42: #{tpu_custom_call.1} parent=0 // pred_check
    _
  $region43: #{tpu_custom_call.1} parent=0 // pred_check_branch
    %380 = sbr.rel (0) target = $region45
  $region44: #{tpu_custom_call.1} parent=0 // pred_region
    _
  $region45: #{tpu_custom_call.1} parent=0 // pred_fallthru
    _
  // Predicated region
  $region46: #{tpu_custom_call.1} parent=0 // pred_check
    _
  $region47: #{tpu_custom_call.1} parent=0 // pred_check_branch
    %382 = sbr.rel (0) target = $region49
  $region48: #{tpu_custom_call.1} parent=0 // pred_region
    _
  $region49: #{tpu_custom_call.1} parent=0 // pred_fallthru
    _
  // Predicated region
  $region50: #{tpu_custom_call.1} parent=0 // pred_check
    _
  $region51: #{tpu_custom_call.1} parent=0 // pred_check_branch
    %384 = sbr.rel (0) target = $region53
  $region52: #{tpu_custom_call.1} parent=0 // pred_region
    _
  $region53: #{tpu_custom_call.1} parent=0 // pred_fallthru
    _

</llo_original>
